<compile_context>
chip_gen: v6e
topology: v6e:2x2x1
jax: 0.10.0
libtpu: 0.0.40
codegen_flags: <defaults>
</compile_context>

<pallas_src>
import functools

import jax
import jax.numpy as jnp
from jax.experimental import pallas as pl
from jax.experimental.pallas import tpu as pltpu


def _round_up(n, m):
    return ((n + m - 1) // m) * m


def _cdiv(a, b):
    return (a + b - 1) // b


_MAX_TB = 4096  # max batch-lane tile; (32, 4096) bf16 x-tile is only ~256 KiB


def _pick_block_batch(B):
    """Batch tile (lane dim): multiple of 128, large to amortize the ~0.35us
    per-grid-step cost, and an even tile count for large B so both v7x TCs
    get work (harmless on v5e/v6e)."""
    if B <= _MAX_TB:
        return _round_up(max(B, 1), 128)           # single grid step
    n_tiles = _cdiv(B, _MAX_TB)
    if n_tiles % 2:
        n_tiles += 1                               # even count for v7x megacore
    return _round_up(_cdiv(B, n_tiles), 128)


def _fused_mlp_kernel(alpha_ref, x_ref, *refs, num_layers, last_act, matmul_dtype):
    """One grid step: full MLP forward for one feature-major (D, TB) tile.

    refs = (w_0, b_0, w_1, b_1, ..., w_{n-1}, b_{n-1}, o_ref).
    Weights (dout, din) / biases (dout, 1) are whole-array VMEM residents
    (index_map -> (0, 0)); intermediate activations never touch HBM.
    """
    o_ref = refs[-1]
    wb_refs = refs[:-1]
    alpha = alpha_ref[0]                           # shared PReLU scalar (SMEM)

    h = x_ref[...]                                 # (Din, TB), matmul_dtype
    for i in range(num_layers):
        w = wb_refs[2 * i][...]                    # (dout, din), matmul_dtype
        b = wb_refs[2 * i + 1][...]                # (dout, 1), f32
        # (dout, din) @ (din, TB) -> (dout, TB); bf16 MXU inputs, f32 accum.
        h = jnp.dot(w, h.astype(matmul_dtype),
                    preferred_element_type=jnp.float32) + b
        if i < num_layers - 1 or last_act:
            # PReLU: max(0, h) + alpha * min(0, h), in f32 (v5e-safe).
            h = jnp.where(h > 0, h, alpha * h)
    o_ref[...] = h.astype(o_ref.dtype)


def mlp_forward(x, params, alpha, *, last_act=False, block_batch=None,
                matmul_dtype=jnp.bfloat16):
    """Fused MLP forward in feature-major (batch-on-lanes) layout.

    x: (B, Din).  params: list of (w, b) with w PyTorch-native (Dout, Din)
    and b (Dout,).  Returns (B, Dout_last) in x.dtype.
    """
    B, Din = x.shape
    num_layers = len(params)
    Dout = params[-1][0].shape[0]
    out_dtype = x.dtype

    if block_batch is None:
        TB = _pick_block_batch(B)
    else:
        TB = _round_up(block_batch, 128)
    Bp = _round_up(B, TB)

    # One transpose + cast in the wrapper so every kernel block is lane-dense.
    x_t = x.astype(matmul_dtype).T                 # (Din, B)
    if Bp != B:
        x_t = jnp.pad(x_t, ((0, 0), (0, Bp - B)))

    alpha1d = jnp.asarray(alpha, jnp.float32).reshape(1)

    flat_wb = []
    wb_specs = []
    param_bytes = 0
    for (w, b) in params:
        dout, din = w.shape
        flat_wb.append(w.astype(matmul_dtype))                       # (dout, din)
        wb_specs.append(pl.BlockSpec((dout, din), lambda i: (0, 0)))
        flat_wb.append(b.astype(jnp.float32).reshape(dout, 1))       # (dout, 1)
        wb_specs.append(pl.BlockSpec((dout, 1), lambda i: (0, 0)))
        param_bytes += dout * din * jnp.dtype(matmul_dtype).itemsize + dout * 4

    # VMEM budget from the actual footprint (double-buffered x/out tiles +
    # resident params) with generous headroom; tiny vs. even v7x's 64 MiB.
    tile_bytes = (Din * TB * jnp.dtype(matmul_dtype).itemsize
                  + Dout * TB * jnp.dtype(out_dtype).itemsize)
    vmem_limit = int(min(64 * 1024 * 1024,
                         max(4 * 1024 * 1024,
                             4 * (2 * tile_bytes + 2 * param_bytes))))

    kernel = functools.partial(
        _fused_mlp_kernel, num_layers=num_layers, last_act=last_act,
        matmul_dtype=matmul_dtype)

    out_t = pl.pallas_call(
        kernel,
        out_shape=jax.ShapeDtypeStruct((Dout, Bp), out_dtype),
        grid=(Bp // TB,),
        in_specs=[
            pl.BlockSpec(memory_space=pltpu.SMEM),       # alpha scalar
            pl.BlockSpec((Din, TB), lambda i: (0, i)),   # x tile, lane-dense
        ] + wb_specs,
        out_specs=pl.BlockSpec((Dout, TB), lambda i: (0, i)),
        compiler_params=pltpu.CompilerParams(
            dimension_semantics=("parallel",),           # v7x megacore sharding
            vmem_limit_bytes=vmem_limit,
        ),
    )(alpha1d, x_t, *flat_wb)

    return out_t[:, :B].T                                # back to (B, Dout)


def init_mlp_params(key, dim_list):
    """Deterministic synthetic init, PyTorch-native weight shapes (Dout, Din)."""
    # TODO(synk): PyTorch picks kaiming/xavier/orthogonal at random per layer;
    # a fixed kaiming-uniform-like scale is used here for determinism.
    params = []
    for i in range(len(dim_list) - 1):
        key, wk = jax.random.split(key)
        fan_in = dim_list[i]
        bound = (6.0 / fan_in) ** 0.5
        w = jax.random.uniform(
            wk, (dim_list[i + 1], dim_list[i]), jnp.float32,   # (Dout, Din)
            minval=-bound, maxval=bound)
        b = jnp.zeros((dim_list[i + 1],), jnp.float32)  # nn.init.constant_(bias, 0)
        params.append((w, b))
    return params


def mlp_reference(x, params, alpha, *, last_act=False, matmul_dtype=jnp.bfloat16):
    """Pure-JAX reference with the same precision model as the kernel
    (bf16 matmul inputs, f32 accumulation, f32 bias + PReLU)."""
    n = len(params)
    h = x.astype(matmul_dtype).astype(jnp.float32)
    for i, (w, b) in enumerate(params):
        h = jnp.dot(h.astype(matmul_dtype), w.astype(matmul_dtype).T,
                    preferred_element_type=jnp.float32) + b.astype(jnp.float32)
        if (i < n - 1) or last_act:
            h = jnp.where(h > 0, h, alpha * h)
    return h.astype(x.dtype)


if __name__ == "__main__":
    key = jax.random.PRNGKey(0)

    dim_list = [32, 64, 48, 16]   # MLP(dim_list=[32, 64, 48, 16])
    batch = 200

    kx, kp = jax.random.split(key)
    x = jax.random.normal(kx, (batch, dim_list[0]), jnp.float32)
    params = init_mlp_params(kp, dim_list)
    alpha = 0.25  # nn.PReLU() default init, single shared parameter

    # block_batch=128 -> Bp=256, grid=(2,): exercises multi-tile weight
    # residency and padded-column slicing. (Default picks one 256-wide tile.)
    out = mlp_forward(x, params, alpha, last_act=False, block_batch=128)
    out = jax.block_until_ready(out)

    ref = mlp_reference(x, params, alpha, last_act=False)
    assert out.shape == (batch, dim_list[-1])
    assert jnp.allclose(out, ref, atol=1e-3, rtol=1e-3), "mismatch vs reference"

    print("KERNEL_OK")
</pallas_src>

<mosaic_0001>
module attributes {stable_mosaic.version = 11 : i64} {
  func.func @_fused_mlp_kernel(%arg0: i32, %arg1: memref<1xf32, #tpu.memory_space<smem>>, %arg2: memref<32x128xbf16, #tpu.memory_space<vmem>>, %arg3: memref<64x32xbf16, #tpu.memory_space<vmem>>, %arg4: memref<64x1xf32, #tpu.memory_space<vmem>>, %arg5: memref<48x64xbf16, #tpu.memory_space<vmem>>, %arg6: memref<48x1xf32, #tpu.memory_space<vmem>>, %arg7: memref<16x48xbf16, #tpu.memory_space<vmem>>, %arg8: memref<16x1xf32, #tpu.memory_space<vmem>>, %arg9: memref<16x128xf32, #tpu.memory_space<vmem>>) attributes {dimension_semantics = [#tpu.dimension_semantics<parallel>], iteration_bounds = array<i64: 2>, scalar_prefetch = 0 : i64, scratch_operands = 0 : i64, tpu.core_type = #tpu.core_type<tc>, window_params = [{transform_indices = @transform_0, window_bounds = array<i64: 1>}, {transform_indices = @transform_1, window_bounds = array<i64: 32, 128>}, {pipeline_mode = #tpu.pipeline_mode<synchronous>, transform_indices = @transform_2, window_bounds = array<i64: 64, 32>}, {pipeline_mode = #tpu.pipeline_mode<synchronous>, transform_indices = @transform_3, window_bounds = array<i64: 64, 1>}, {pipeline_mode = #tpu.pipeline_mode<synchronous>, transform_indices = @transform_4, window_bounds = array<i64: 48, 64>}, {pipeline_mode = #tpu.pipeline_mode<synchronous>, transform_indices = @transform_5, window_bounds = array<i64: 48, 1>}, {pipeline_mode = #tpu.pipeline_mode<synchronous>, transform_indices = @transform_6, window_bounds = array<i64: 16, 48>}, {pipeline_mode = #tpu.pipeline_mode<synchronous>, transform_indices = @transform_7, window_bounds = array<i64: 16, 1>}, {transform_indices = @transform_8, window_bounds = array<i64: 16, 128>}]} {
    %c0 = arith.constant 0 : index
    %0 = memref.load %arg1[%c0] : memref<1xf32, #tpu.memory_space<smem>>
    %c0_0 = arith.constant 0 : index
    %c0_1 = arith.constant 0 : index
    %1 = vector.load %arg2[%c0_0, %c0_1] : memref<32x128xbf16, #tpu.memory_space<vmem>>, vector<32x128xbf16>
    %c0_2 = arith.constant 0 : index
    %c0_3 = arith.constant 0 : index
    %2 = vector.load %arg3[%c0_2, %c0_3] : memref<64x32xbf16, #tpu.memory_space<vmem>>, vector<64x32xbf16>
    %c0_4 = arith.constant 0 : index
    %c0_5 = arith.constant 0 : index
    %3 = vector.load %arg4[%c0_4, %c0_5] : memref<64x1xf32, #tpu.memory_space<vmem>>, vector<64x1xf32>
    %cst = arith.constant dense<0.000000e+00> : vector<64x128xf32>
    %4 = tpu.matmul %2, %1, %cst {dimension_numbers = #tpu.dot_dimension_numbers<[1], [0], [0], [1], [0, 0, 1, 1], [], []>} : vector<64x32xbf16>, vector<32x128xbf16>, vector<64x128xf32> -> vector<64x128xf32>
    %5 = vector.broadcast %3 : vector<64x1xf32> to vector<64x128xf32>
    %6 = arith.addf %4, %5 : vector<64x128xf32>
    %cst_6 = arith.constant 0.000000e+00 : f32
    %7 = vector.broadcast %cst_6 : f32 to vector<64x128xf32>
    %8 = arith.cmpf ogt, %6, %7 : vector<64x128xf32>
    %9 = vector.broadcast %0 : f32 to vector<64x128xf32>
    %10 = arith.mulf %9, %6 : vector<64x128xf32>
    %11 = arith.select %8, %6, %10 : vector<64x128xi1>, vector<64x128xf32>
    %c0_7 = arith.constant 0 : index
    %c0_8 = arith.constant 0 : index
    %12 = vector.load %arg5[%c0_7, %c0_8] : memref<48x64xbf16, #tpu.memory_space<vmem>>, vector<48x64xbf16>
    %c0_9 = arith.constant 0 : index
    %c0_10 = arith.constant 0 : index
    %13 = vector.load %arg6[%c0_9, %c0_10] : memref<48x1xf32, #tpu.memory_space<vmem>>, vector<48x1xf32>
    %14 = arith.truncf %11 : vector<64x128xf32> to vector<64x128xbf16>
    %cst_11 = arith.constant dense<0.000000e+00> : vector<48x128xf32>
    %15 = tpu.matmul %12, %14, %cst_11 {dimension_numbers = #tpu.dot_dimension_numbers<[1], [0], [0], [1], [0, 0, 1, 1], [], []>} : vector<48x64xbf16>, vector<64x128xbf16>, vector<48x128xf32> -> vector<48x128xf32>
    %16 = vector.broadcast %13 : vector<48x1xf32> to vector<48x128xf32>
    %17 = arith.addf %15, %16 : vector<48x128xf32>
    %cst_12 = arith.constant 0.000000e+00 : f32
    %18 = vector.broadcast %cst_12 : f32 to vector<48x128xf32>
    %19 = arith.cmpf ogt, %17, %18 : vector<48x128xf32>
    %20 = vector.broadcast %0 : f32 to vector<48x128xf32>
    %21 = arith.mulf %20, %17 : vector<48x128xf32>
    %22 = arith.select %19, %17, %21 : vector<48x128xi1>, vector<48x128xf32>
    %c0_13 = arith.constant 0 : index
    %c0_14 = arith.constant 0 : index
    %23 = vector.load %arg7[%c0_13, %c0_14] : memref<16x48xbf16, #tpu.memory_space<vmem>>, vector<16x48xbf16>
    %c0_15 = arith.constant 0 : index
    %c0_16 = arith.constant 0 : index
    %24 = vector.load %arg8[%c0_15, %c0_16] : memref<16x1xf32, #tpu.memory_space<vmem>>, vector<16x1xf32>
    %25 = arith.truncf %22 : vector<48x128xf32> to vector<48x128xbf16>
    %cst_17 = arith.constant dense<0.000000e+00> : vector<16x128xf32>
    %26 = tpu.matmul %23, %25, %cst_17 {dimension_numbers = #tpu.dot_dimension_numbers<[1], [0], [0], [1], [0, 0, 1, 1], [], []>} : vector<16x48xbf16>, vector<48x128xbf16>, vector<16x128xf32> -> vector<16x128xf32>
    %27 = vector.broadcast %24 : vector<16x1xf32> to vector<16x128xf32>
    %28 = arith.addf %26, %27 : vector<16x128xf32>
    %c0_18 = arith.constant 0 : index
    %c0_19 = arith.constant 0 : index
    %29 = vector.load %arg9[%c0_18, %c0_19] : memref<16x128xf32, #tpu.memory_space<vmem>>, vector<16x128xf32>
    tpu.vector_store %arg9[%c0_18, %c0_19], %28 {strides = array<i32>} : memref<16x128xf32, #tpu.memory_space<vmem>>, vector<16x128xf32>,
    return
  }
  func.func @transform_0(%arg0: i32) -> i32 {
    %c0_i32 = arith.constant 0 : i32
    %c0_i32_0 = arith.constant 0 : i32
    return %c0_i32 : i32
  }
  func.func @transform_1(%arg0: i32) -> (i32, i32) {
    %c0_i32 = arith.constant 0 : i32
    %c0_i32_0 = arith.constant 0 : i32
    return %c0_i32, %arg0 : i32, i32
  }
  func.func @transform_2(%arg0: i32) -> (i32, i32) {
    %c0_i32 = arith.constant 0 : i32
    %c0_i32_0 = arith.constant 0 : i32
    %c0_i32_1 = arith.constant 0 : i32
    return %c0_i32, %c0_i32_0 : i32, i32
  }
  func.func @transform_3(%arg0: i32) -> (i32, i32) {
    %c0_i32 = arith.constant 0 : i32
    %c0_i32_0 = arith.constant 0 : i32
    %c0_i32_1 = arith.constant 0 : i32
    return %c0_i32, %c0_i32_0 : i32, i32
  }
  func.func @transform_4(%arg0: i32) -> (i32, i32) {
    %c0_i32 = arith.constant 0 : i32
    %c0_i32_0 = arith.constant 0 : i32
    %c0_i32_1 = arith.constant 0 : i32
    return %c0_i32, %c0_i32_0 : i32, i32
  }
  func.func @transform_5(%arg0: i32) -> (i32, i32) {
    %c0_i32 = arith.constant 0 : i32
    %c0_i32_0 = arith.constant 0 : i32
    %c0_i32_1 = arith.constant 0 : i32
    return %c0_i32, %c0_i32_0 : i32, i32
  }
  func.func @transform_6(%arg0: i32) -> (i32, i32) {
    %c0_i32 = arith.constant 0 : i32
    %c0_i32_0 = arith.constant 0 : i32
    %c0_i32_1 = arith.constant 0 : i32
    return %c0_i32, %c0_i32_0 : i32, i32
  }
  func.func @transform_7(%arg0: i32) -> (i32, i32) {
    %c0_i32 = arith.constant 0 : i32
    %c0_i32_0 = arith.constant 0 : i32
    %c0_i32_1 = arith.constant 0 : i32
    return %c0_i32, %c0_i32_0 : i32, i32
  }
  func.func @transform_8(%arg0: i32) -> (i32, i32) {
    %c0_i32 = arith.constant 0 : i32
    %c0_i32_0 = arith.constant 0 : i32
    return %c0_i32, %arg0 : i32, i32
  }
}

</mosaic_0001>

<llo_original>
// kernel: tpu_custom_call.1
$region0: #{tpu_custom_call.1}
  #allocation0 [shape = 'u32[]', space=smem, size = 0x4, offset = 0x4, fixed_abs, tag = 'smem constant byte address 0x4 - core index']
  #allocation1 [shape = 'u32[144,128]{1,0:T(1,128)}', space=vmem, size = 0x12000, scoped, tag = 'internal scratch']
  #allocation2 [shape = 'f32[1]{0:T(128)S(6)}', space=smem, size = 0x200, scoped, tag = 'scoped memory for tpu_custom_call.1']
  %s0 = inlined_call_operand.<no memory space> [shape: f32[1], index: 0, kind: input, shape index: {}]
  %s1 = inlined_call_operand.vmem [shape: bf16[32,256], index: 1, kind: input, shape index: {}]
  %s2 = inlined_call_operand.vmem [shape: bf16[64,32], index: 2, kind: input, shape index: {}]
  %s3 = inlined_call_operand.vmem [shape: f32[64,1], index: 3, kind: input, shape index: {}]
  %s4 = inlined_call_operand.vmem [shape: bf16[48,64], index: 4, kind: input, shape index: {}]
  %s5 = inlined_call_operand.vmem [shape: f32[48,1], index: 5, kind: input, shape index: {}]
  %s6 = inlined_call_operand.vmem [shape: bf16[16,48], index: 6, kind: input, shape index: {}]
  %s7 = inlined_call_operand.vmem [shape: f32[16,1], index: 7, kind: input, shape index: {}]
  %s8 = inlined_call_operand.hbm [shape: f32[16,256], index: 8, kind: output, shape index: {}]
  %s9 = sld [smem:[#allocation0]]
  $region106: #{tpu_custom_call.1} parent=0
    _
  %s11 = ssub.s32 1, %s9
  %s12 = scalar_select 0, %s11, %s9
  %13 = sst [smem:[#allocation2]] %s0
  $region1: #{tpu_custom_call.1} parent=0
    #allocation3 [shape = 'u8[16384]{0}', space=vmem, size = 0x4000, scoped, tag = 'input window, operand 1']
    #allocation4 [shape = 'u8[16384]{0}', space=vmem, size = 0x4000, scoped, tag = 'output window, operand 0']
    #allocation5 [shape = 's32[2]{0}', space=sflag, size = 0x8, scoped, tag = 'scoped memory for tpu_custom_call.1']
    %14 = vsyncpa [#allocation5], 0
    %s15 = scalar_lea.sflag [#allocation5], 1
    %16 = vsyncpa %s15, 0
    loop: start=0, step=1, limit=4
    $region2: #{tpu_custom_call.1} parent=1 // loop_pre_header
      _
    $region3: #{tpu_custom_call.1} parent=1 // loop_header
      %s18 = sphi 0, %s22
      %p19 = scmp.ge.s32.totalorder %s18, 4
      %s26 = sphi 0, %s26
      %s28 = sphi 0, %s26
      %s29 = sphi 0, %s28
      %s43 = sphi 0, %s29
      %s49 = sphi 0, %s51
      %s52 = sphi 0, %s49
      %s53 = sphi 0, %s52
      %s69 = sphi 0, %s53
      %s73 = sphi 0, %s73
      %s75 = sphi 0, %s73
      %s76 = sphi 0, %s75
      %s90 = sphi 0, %s76
      %s94 = sphi 0, %s94
      %s96 = sphi 0, %s94
      %s97 = sphi 0, %s96
      %s111 = sphi 0, %s97
      %s115 = sphi 0, %s115
      %s117 = sphi 0, %s115
      %s118 = sphi 0, %s117
      %s132 = sphi 0, %s118
      %s136 = sphi 0, %s136
      %s138 = sphi 0, %s136
      %s139 = sphi 0, %s138
      %s153 = sphi 0, %s139
      %s157 = sphi 0, %s157
      %s159 = sphi 0, %s157
      %s160 = sphi 0, %s159
      %s174 = sphi 0, %s160
      %s178 = sphi 0, %s178
      %s180 = sphi 0, %s178
      %s181 = sphi 0, %s180
      %s195 = sphi 0, %s181
      %s201 = sphi 0, %s203
      %s204 = sphi 0, %s201
      %s205 = sphi 0, %s204
      %s221 = sphi 0, %s205
    $region4: #{tpu_custom_call.1} parent=1 // loop_header_branch
      %21 = sbr.rel (%p19) target = $region8
    $region5: #{tpu_custom_call.1} parent=1 // loop_body
      %s23 = ssub.s32 %s18, 1
      %s24 = ssub.s32 %s18, 2
      %s25 = sadd.s32 %s18, 1
      %s27 = sadd.s32 %s26, 1
      %p30 = scmp.eq.s32.totalorder %s18, 1
      %p31 = scmp.ne.s32.totalorder %s26, %s28
      %p32 = scmp.eq.s32.totalorder %s18, 0
      %p33 = por %p31, %p32
      %p34 = scmp.ne.s32.totalorder %s26, %s28
      %p35 = scmp.eq.s32.totalorder %s23, 1
      %p36 = por %p34, %p35
      %p37 = scmp.ne.s32.totalorder %s28, %s29
      %p38 = scmp.eq.s32.totalorder %s23, 0
      %p39 = por %p37, %p38
      %p40 = scmp.ne.s32.totalorder %s28, %s29
      %p41 = scmp.eq.s32.totalorder %s24, 1
      %p42 = por %p40, %p41
      %p44 = scmp.ne.s32.totalorder %s29, %s43
      %p45 = scmp.eq.s32.totalorder %s24, 0
      %p46 = por %p44, %p45
      %s47 = ssub.s32 %s18, %s25
      %p48 = scmp.eq.s32.totalorder %s47, 0
      %s50 = sadd.s32 %s49, 1
      %s51 = scalar_select %p48, %s49, %s50
      %p54 = pneg %p48
      %p55 = scmp.eq.s32.totalorder %s18, 1
      %p56 = por %p54, %p55
      %p57 = scmp.ne.s32.totalorder %s49, %s52
      %p58 = scmp.eq.s32.totalorder %s18, 0
      %p59 = por %p57, %p58
      %p60 = scmp.ne.s32.totalorder %s49, %s52
      %p61 = scmp.eq.s32.totalorder %s23, 1
      %p62 = por %p60, %p61
      %p63 = scmp.ne.s32.totalorder %s52, %s53
      %p64 = scmp.eq.s32.totalorder %s23, 0
      %p65 = por %p63, %p64
      %p66 = scmp.ne.s32.totalorder %s52, %s53
      %p67 = scmp.eq.s32.totalorder %s24, 1
      %p68 = por %p66, %p67
      %p70 = scmp.ne.s32.totalorder %s53, %s69
      %p71 = scmp.eq.s32.totalorder %s24, 0
      %p72 = por %p70, %p71
      %s74 = sadd.s32 %s73, 1
      %p77 = scmp.eq.s32.totalorder %s18, 1
      %p78 = scmp.ne.s32.totalorder %s73, %s75
      %p79 = scmp.eq.s32.totalorder %s18, 0
      %p80 = por %p78, %p79
      %p81 = scmp.ne.s32.totalorder %s73, %s75
      %p82 = scmp.eq.s32.totalorder %s23, 1
      %p83 = por %p81, %p82
      %p84 = scmp.ne.s32.totalorder %s75, %s76
      %p85 = scmp.eq.s32.totalorder %s23, 0
      %p86 = por %p84, %p85
      %p87 = scmp.ne.s32.totalorder %s75, %s76
      %p88 = scmp.eq.s32.totalorder %s24, 1
      %p89 = por %p87, %p88
      %p91 = scmp.ne.s32.totalorder %s76, %s90
      %p92 = scmp.eq.s32.totalorder %s24, 0
      %p93 = por %p91, %p92
      %s95 = sadd.s32 %s94, 1
      %p98 = scmp.eq.s32.totalorder %s18, 1
      %p99 = scmp.ne.s32.totalorder %s94, %s96
      %p100 = scmp.eq.s32.totalorder %s18, 0
      %p101 = por %p99, %p100
      %p102 = scmp.ne.s32.totalorder %s94, %s96
      %p103 = scmp.eq.s32.totalorder %s23, 1
      %p104 = por %p102, %p103
      %p105 = scmp.ne.s32.totalorder %s96, %s97
      %p106 = scmp.eq.s32.totalorder %s23, 0
      %p107 = por %p105, %p106
      %p108 = scmp.ne.s32.totalorder %s96, %s97
      %p109 = scmp.eq.s32.totalorder %s24, 1
      %p110 = por %p108, %p109
      %p112 = scmp.ne.s32.totalorder %s97, %s111
      %p113 = scmp.eq.s32.totalorder %s24, 0
      %p114 = por %p112, %p113
      %s116 = sadd.s32 %s115, 1
      %p119 = scmp.eq.s32.totalorder %s18, 1
      %p120 = scmp.ne.s32.totalorder %s115, %s117
      %p121 = scmp.eq.s32.totalorder %s18, 0
      %p122 = por %p120, %p121
      %p123 = scmp.ne.s32.totalorder %s115, %s117
      %p124 = scmp.eq.s32.totalorder %s23, 1
      %p125 = por %p123, %p124
      %p126 = scmp.ne.s32.totalorder %s117, %s118
      %p127 = scmp.eq.s32.totalorder %s23, 0
      %p128 = por %p126, %p127
      %p129 = scmp.ne.s32.totalorder %s117, %s118
      %p130 = scmp.eq.s32.totalorder %s24, 1
      %p131 = por %p129, %p130
      %p133 = scmp.ne.s32.totalorder %s118, %s132
      %p134 = scmp.eq.s32.totalorder %s24, 0
      %p135 = por %p133, %p134
      %s137 = sadd.s32 %s136, 1
      %p140 = scmp.eq.s32.totalorder %s18, 1
      %p141 = scmp.ne.s32.totalorder %s136, %s138
      %p142 = scmp.eq.s32.totalorder %s18, 0
      %p143 = por %p141, %p142
      %p144 = scmp.ne.s32.totalorder %s136, %s138
      %p145 = scmp.eq.s32.totalorder %s23, 1
      %p146 = por %p144, %p145
      %p147 = scmp.ne.s32.totalorder %s138, %s139
      %p148 = scmp.eq.s32.totalorder %s23, 0
      %p149 = por %p147, %p148
      %p150 = scmp.ne.s32.totalorder %s138, %s139
      %p151 = scmp.eq.s32.totalorder %s24, 1
      %p152 = por %p150, %p151
      %p154 = scmp.ne.s32.totalorder %s139, %s153
      %p155 = scmp.eq.s32.totalorder %s24, 0
      %p156 = por %p154, %p155
      %s158 = sadd.s32 %s157, 1
      %p161 = scmp.eq.s32.totalorder %s18, 1
      %p162 = scmp.ne.s32.totalorder %s157, %s159
      %p163 = scmp.eq.s32.totalorder %s18, 0
      %p164 = por %p162, %p163
      %p165 = scmp.ne.s32.totalorder %s157, %s159
      %p166 = scmp.eq.s32.totalorder %s23, 1
      %p167 = por %p165, %p166
      %p168 = scmp.ne.s32.totalorder %s159, %s160
      %p169 = scmp.eq.s32.totalorder %s23, 0
      %p170 = por %p168, %p169
      %p171 = scmp.ne.s32.totalorder %s159, %s160
      %p172 = scmp.eq.s32.totalorder %s24, 1
      %p173 = por %p171, %p172
      %p175 = scmp.ne.s32.totalorder %s160, %s174
      %p176 = scmp.eq.s32.totalorder %s24, 0
      %p177 = por %p175, %p176
      %s179 = sadd.s32 %s178, 1
      %p182 = scmp.eq.s32.totalorder %s18, 1
      %p183 = scmp.ne.s32.totalorder %s178, %s180
      %p184 = scmp.eq.s32.totalorder %s18, 0
      %p185 = por %p183, %p184
      %p186 = scmp.ne.s32.totalorder %s178, %s180
      %p187 = scmp.eq.s32.totalorder %s23, 1
      %p188 = por %p186, %p187
      %p189 = scmp.ne.s32.totalorder %s180, %s181
      %p190 = scmp.eq.s32.totalorder %s23, 0
      %p191 = por %p189, %p190
      %p192 = scmp.ne.s32.totalorder %s180, %s181
      %p193 = scmp.eq.s32.totalorder %s24, 1
      %p194 = por %p192, %p193
      %p196 = scmp.ne.s32.totalorder %s181, %s195
      %p197 = scmp.eq.s32.totalorder %s24, 0
      %p198 = por %p196, %p197
      %s199 = ssub.s32 %s18, %s25
      %p200 = scmp.eq.s32.totalorder %s199, 0
      %s202 = sadd.s32 %s201, 1
      %s203 = scalar_select %p200, %s201, %s202
      %p206 = pneg %p200
      %p207 = scmp.eq.s32.totalorder %s18, 1
      %p208 = por %p206, %p207
      %p209 = scmp.ne.s32.totalorder %s201, %s204
      %p210 = scmp.eq.s32.totalorder %s18, 0
      %p211 = por %p209, %p210
      %p212 = scmp.ne.s32.totalorder %s201, %s204
      %p213 = scmp.eq.s32.totalorder %s23, 1
      %p214 = por %p212, %p213
      %p215 = scmp.ne.s32.totalorder %s204, %s205
      %p216 = scmp.eq.s32.totalorder %s23, 0
      %p217 = por %p215, %p216
      %p218 = scmp.ne.s32.totalorder %s204, %s205
      %p219 = scmp.eq.s32.totalorder %s24, 1
      %p220 = por %p218, %p219
      %p222 = scmp.ne.s32.totalorder %s205, %s221
      %p223 = scmp.eq.s32.totalorder %s24, 0
      %p224 = por %p222, %p223
      %p225 = scmp.le.s32.totalorder 1, %s18
      %p226 = scmp.lt.s32.totalorder %s18, 3
      %p227 = pnand %p225, %p226
      %p228 = pneg %p227
      // Predicated region
      $region9: #{tpu_custom_call.1} parent=5 // pred_check
        _
      $region10: #{tpu_custom_call.1} parent=5 // pred_check_branch
        %230 = sbr.rel (%p227) target = $region12
      $region11: #{tpu_custom_call.1} parent=5 // pred_region
        %s231 = ssub.s32 %s18, 1
        // Predicated region
        $region13: #{tpu_custom_call.1} parent=11 // pred_check
          %p232 = pneg %p39
        $region14: #{tpu_custom_call.1} parent=11 // pred_check_branch
          %234 = sbr.rel (%p232) target = $region16
        $region15: #{tpu_custom_call.1} parent=11 // pred_region
          _
        $region16: #{tpu_custom_call.1} parent=11 // pred_fallthru
          _
        // Predicated region
        $region17: #{tpu_custom_call.1} parent=11 // pred_check
          %p235 = pneg %p86
        $region18: #{tpu_custom_call.1} parent=11 // pred_check_branch
          %237 = sbr.rel (%p235) target = $region20
        $region19: #{tpu_custom_call.1} parent=11 // pred_region
          _
        $region20: #{tpu_custom_call.1} parent=11 // pred_fallthru
          _
        // Predicated region
        $region21: #{tpu_custom_call.1} parent=11 // pred_check
          %p238 = pneg %p107
        $region22: #{tpu_custom_call.1} parent=11 // pred_check_branch
          %240 = sbr.rel (%p238) target = $region24
        $region23: #{tpu_custom_call.1} parent=11 // pred_region
          _
        $region24: #{tpu_custom_call.1} parent=11 // pred_fallthru
          _
        // Predicated region
        $region25: #{tpu_custom_call.1} parent=11 // pred_check
          %p241 = pneg %p128
        $region26: #{tpu_custom_call.1} parent=11 // pred_check_branch
          %243 = sbr.rel (%p241) target = $region28
        $region27: #{tpu_custom_call.1} parent=11 // pred_region
          _
        $region28: #{tpu_custom_call.1} parent=11 // pred_fallthru
          _
        // Predicated region
        $region29: #{tpu_custom_call.1} parent=11 // pred_check
          %p244 = pneg %p149
        $region30: #{tpu_custom_call.1} parent=11 // pred_check_branch
          %246 = sbr.rel (%p244) target = $region32
        $region31: #{tpu_custom_call.1} parent=11 // pred_region
          _
        $region32: #{tpu_custom_call.1} parent=11 // pred_fallthru
          _
        // Predicated region
        $region33: #{tpu_custom_call.1} parent=11 // pred_check
          %p247 = pneg %p170
        $region34: #{tpu_custom_call.1} parent=11 // pred_check_branch
          %249 = sbr.rel (%p247) target = $region36
        $region35: #{tpu_custom_call.1} parent=11 // pred_region
          _
        $region36: #{tpu_custom_call.1} parent=11 // pred_fallthru
          _
        // Predicated region
        $region37: #{tpu_custom_call.1} parent=11 // pred_check
          %p250 = pneg %p191
        $region38: #{tpu_custom_call.1} parent=11 // pred_check_branch
          %252 = sbr.rel (%p250) target = $region40
        $region39: #{tpu_custom_call.1} parent=11 // pred_region
          _
        $region40: #{tpu_custom_call.1} parent=11 // pred_fallthru
          _
      $region12: #{tpu_custom_call.1} parent=5 // pred_fallthru
        _
      %p253 = scmp.lt.s32.totalorder %s18, 2
      // Predicated region
      $region41: #{tpu_custom_call.1} parent=5 // pred_check
        %p254 = pneg %p253
      $region42: #{tpu_custom_call.1} parent=5 // pred_check_branch
        %256 = sbr.rel (%p254) target = $region44
      $region43: #{tpu_custom_call.1} parent=5 // pred_region
        // Predicated region
        $region45: #{tpu_custom_call.1} parent=43 // pred_check
          %p257 = pneg %p59
        $region46: #{tpu_custom_call.1} parent=43 // pred_check_branch
          %259 = sbr.rel (%p257) target = $region48
        $region47: #{tpu_custom_call.1} parent=43 // pred_region
          %s260 = sand.u32 %s49, 1
          %s261 = sand.u32 %s49, 1
          %s262 = smul.addr %s261, 16
          %s263 = scalar_lea.vmem [#allocation3], %s262
          %s264 = smul.addr %s18, 4
          %s265 = scalar_lea.vmem %s1, %s264
          // Predicated region
          $region49: #{tpu_custom_call.1} parent=47 // pred_check
            _
          $region50: #{tpu_custom_call.1} parent=47 // pred_check_branch
            %267 = sbr.rel (0) target = $region52
          $region51: #{tpu_custom_call.1} parent=47 // pred_region
            // Predicated region
            $region53: #{tpu_custom_call.1} parent=51 // pred_check
              _
            $region54: #{tpu_custom_call.1} parent=51 // pred_check_branch
              %269 = sbr.rel target = $region56
            $region55: #{tpu_custom_call.1} parent=51 // pred_region
              // Predicated region
              $region68: #{tpu_custom_call.1} parent=55 // pred_check
                _
              $region69: #{tpu_custom_call.1} parent=55 // pred_check_branch
                %291 = sbr.rel (0) target = $region71
              $region70: #{tpu_custom_call.1} parent=55 // pred_region
                loop: start=0, step=1, limit=1
                $region72: #{tpu_custom_call.1} parent=70 // loop_pre_header
                  _
                $region73: #{tpu_custom_call.1} parent=70 // loop_header
                  %s293 = sphi 0, %s297
                  %p294 = scmp.ge.s32.totalorder %s293, 1
                  %s298 = sphi %s265, %s265
                  %s299 = sphi %s263, %s263
                $region74: #{tpu_custom_call.1} parent=70 // loop_header_branch
                  %296 = sbr.rel (%p294) target = $region78
                $region75: #{tpu_custom_call.1} parent=70 // loop_body
                  _
                $region76: #{tpu_custom_call.1} parent=70 // loop_footer
                  %s297 = sadd.s32 1, %s293
                $region77: #{tpu_custom_call.1} parent=70 // loop_footer_branch
                  %292 = sbr.rel target = $region73
                $region78: #{tpu_custom_call.1} parent=70 // loop_exit
                  _
                %s301 = ssub.s32 16, 1
                loop: start=0, step=1, limit=1
                $region79: #{tpu_custom_call.1} parent=70 // loop_pre_header
                  _
                $region80: #{tpu_custom_call.1} parent=70 // loop_header
                  %s303 = sphi 0, %s307
                  %p304 = scmp.ge.s32.totalorder %s303, 1
                  %s308 = sphi %s265, %s265
                  %s309 = sphi %s263, %s263
                $region81: #{tpu_custom_call.1} parent=70 // loop_header_branch
                  %306 = sbr.rel (%p304) target = $region85
                $region82: #{tpu_custom_call.1} parent=70 // loop_body
                  %v310 = vld [vmem:[%s308] sm:%s301]
                  %311 = vst [vmem:[%s309] sm:%s301] %v310
                  %v312 = vld [vmem:[%s308 + $0x8] sm:%s301]
                  %313 = vst [vmem:[%s309 + $0x4] sm:%s301] %v312
                  %v314 = vld [vmem:[%s308 + $0x10] sm:%s301]
                  %315 = vst [vmem:[%s309 + $0x8] sm:%s301] %v314
                  %v316 = vld [vmem:[%s308 + $0x18] sm:%s301]
                  %317 = vst [vmem:[%s309 + $0xc] sm:%s301] %v316
                $region83: #{tpu_custom_call.1} parent=70 // loop_footer
                  %s307 = sadd.s32 1, %s303
                $region84: #{tpu_custom_call.1} parent=70 // loop_footer_branch
                  %302 = sbr.rel target = $region80
                $region85: #{tpu_custom_call.1} parent=70 // loop_exit
                  _
              $region71: #{tpu_custom_call.1} parent=55 // pred_fallthru
                _
            $region56: #{tpu_custom_call.1} parent=51 // pred_fallthru
              _
            // Predicated region
            $region57: #{tpu_custom_call.1} parent=51 // pred_check
              _
            $region58: #{tpu_custom_call.1} parent=51 // pred_check_branch
              %271 = sbr.rel (0) target = $region60
            $region59: #{tpu_custom_call.1} parent=51 // pred_region
              %s273 = ssub.s32 16, 1
              loop: start=0, step=1, limit=1
              $region61: #{tpu_custom_call.1} parent=59 // loop_pre_header
                _
              $region62: #{tpu_custom_call.1} parent=59 // loop_header
                %s275 = sphi 0, %s279
                %p276 = scmp.ge.s32.totalorder %s275, 1
                %s280 = sphi %s265, %s265
                %s281 = sphi %s263, %s263
              $region63: #{tpu_custom_call.1} parent=59 // loop_header_branch
                %278 = sbr.rel (%p276) target = $region67
              $region64: #{tpu_custom_call.1} parent=59 // loop_body
                %v282 = vld [vmem:[%s280] sm:%s273]
                %283 = vst [vmem:[%s281] sm:%s273] %v282
                %v284 = vld [vmem:[%s280 + $0x8] sm:%s273]
                %285 = vst [vmem:[%s281 + $0x4] sm:%s273] %v284
                %v286 = vld [vmem:[%s280 + $0x10] sm:%s273]
                %287 = vst [vmem:[%s281 + $0x8] sm:%s273] %v286
                %v288 = vld [vmem:[%s280 + $0x18] sm:%s273]
                %289 = vst [vmem:[%s281 + $0xc] sm:%s273] %v288
              $region65: #{tpu_custom_call.1} parent=59 // loop_footer
                %s279 = sadd.s32 1, %s275
              $region66: #{tpu_custom_call.1} parent=59 // loop_footer_branch
                %274 = sbr.rel target = $region62
              $region67: #{tpu_custom_call.1} parent=59 // loop_exit
                _
            $region60: #{tpu_custom_call.1} parent=51 // pred_fallthru
              _
          $region52: #{tpu_custom_call.1} parent=47 // pred_fallthru
            _
          %318 = vnop
        $region48: #{tpu_custom_call.1} parent=43 // pred_fallthru
          _
      $region44: #{tpu_custom_call.1} parent=5 // pred_fallthru
        _
      %p319 = scmp.le.s32.totalorder 1, %s18
      %p320 = scmp.lt.s32.totalorder %s18, 3
      %p321 = pnand %p319, %p320
      %p322 = pneg %p321
      // Predicated region
      $region86: #{tpu_custom_call.1} parent=5 // pred_check
        _
      $region87: #{tpu_custom_call.1} parent=5 // pred_check_branch
        %324 = sbr.rel (%p321) target = $region89
      $region88: #{tpu_custom_call.1} parent=5 // pred_region
        %s325 = ssub.s32 %s18, 1
        %s326 = sand.u32 %s52, 1
        %s327 = sand.u32 %s52, 1
        %s328 = smul.addr %s327, 16
        %s329 = scalar_lea.vmem [#allocation3], %s328
        // Predicated region
        $region90: #{tpu_custom_call.1} parent=88 // pred_check
          %p330 = pneg %p65
        $region91: #{tpu_custom_call.1} parent=88 // pred_check_branch
          %332 = sbr.rel (%p330) target = $region93
        $region92: #{tpu_custom_call.1} parent=88 // pred_region
          _
        $region93: #{tpu_custom_call.1} parent=88 // pred_fallthru
          _
        %p333 = pneg %p39
        %p334 = pneg %p36
        %s335 = sand.u32 %s52, 1
        %s336 = sand.u32 %s52, 1
        %s337 = smul.addr %s336, 16
        %s338 = scalar_lea.vmem [#allocation3], %s337
        %p339 = pneg %p65
        %p340 = pneg %p62
        %p341 = pneg %p86
        %p342 = pneg %p83
        %p343 = pneg %p107
        %p344 = pneg %p104
        %p345 = pneg %p128
        %p346 = pneg %p125
        %p347 = pneg %p149
        %p348 = pneg %p146
        %p349 = pneg %p170
        %p350 = pneg %p167
        %p351 = pneg %p191
        %p352 = pneg %p188
        %p353 = pneg %p217
        %p354 = pneg %p214
        %s355 = sand.u32 %s204, 1
        %s356 = scalar_lea.sflag [#allocation5], %s355
        %s357 = sand.u32 %s204, 1
        %s358 = smul.addr %s357, 16
        %s359 = scalar_lea.vmem [#allocation4], %s358
        %s361 = sld [smem:[#allocation2]]
        %v362 = vld [vmem:[%s329] sm:$0xf]
        %v363 = vld [vmem:[%s329 + $0x4] sm:$0xf]
        %v364 = vld [vmem:[%s329 + $0x8] sm:$0xf]
        %v365 = vld [vmem:[%s329 + $0xc] sm:$0xf]
        %v366 = vld [vmem:[%s2] sm:$0xf]
        %v367 = vld [vmem:[%s2 + $0x4] sm:$0xf]
        %v368 = vld [vmem:[%s2 + $0x8] sm:$0xf]
        %v369 = vld [vmem:[%s2 + $0xc] sm:$0xf]
        %v370 = vld [vmem:[%s2 + $0x10] sm:$0xf]
        %v371 = vld [vmem:[%s2 + $0x14] sm:$0xf]
        %v372 = vld [vmem:[%s2 + $0x18] sm:$0xf]
        %v373 = vld [vmem:[%s2 + $0x1c] sm:$0xf]
        %v374 = vld [vmem:[%s3] sm:$0xff]
        %v375 = vld [vmem:[%s3 + $0x8] sm:$0xff]
        %v376 = vld [vmem:[%s3 + $0x10] sm:$0xff]
        %v377 = vld [vmem:[%s3 + $0x18] sm:$0xff]
        %v378 = vld [vmem:[%s3 + $0x20] sm:$0xff]
        %v379 = vld [vmem:[%s3 + $0x28] sm:$0xff]
        %v380 = vld [vmem:[%s3 + $0x30] sm:$0xff]
        %v381 = vld [vmem:[%s3 + $0x38] sm:$0xff]
        %383 = vset.pattern.permute.xlu0 0
        %384 = vperm.xlu0 %383, %v374
        %v385 = vpop.permute.xlu0 %384
        %388 = vset.pattern.permute.xlu0 0
        %389 = vperm.xlu0 %388, %v375
        %v390 = vpop.permute.xlu0 %389
        %393 = vset.pattern.permute.xlu0 0
        %394 = vperm.xlu0 %393, %v376
        %v395 = vpop.permute.xlu0 %394
        %398 = vset.pattern.permute.xlu0 0
        %399 = vperm.xlu0 %398, %v377
        %v400 = vpop.permute.xlu0 %399
        %403 = vset.pattern.permute.xlu0 0
        %404 = vperm.xlu0 %403, %v378
        %v405 = vpop.permute.xlu0 %404
        %408 = vset.pattern.permute.xlu0 0
        %409 = vperm.xlu0 %408, %v379
        %v410 = vpop.permute.xlu0 %409
        %413 = vset.pattern.permute.xlu0 0
        %414 = vperm.xlu0 %413, %v380
        %v415 = vpop.permute.xlu0 %414
        %418 = vset.pattern.permute.xlu0 0
        %419 = vperm.xlu0 %418, %v381
        %v420 = vpop.permute.xlu0 %419
        %v430 = vunpack.c.l.b16 %v366
        %v431 = vunpack.c.l.b16 %v367
        %v432 = vunpack.c.l.b16 %v368
        %v433 = vunpack.c.l.b16 %v369
        %v434 = vunpack.c.l.b16 %v370
        %v435 = vunpack.c.l.b16 %v371
        %v436 = vunpack.c.l.b16 %v372
        %v437 = vunpack.c.l.b16 %v373
        %v438 = vpack.c.b16 %v431, %v430
        %v439 = vpack.c.b16 %v433, %v432
        %v440 = vpack.c.b16 %v435, %v434
        %v441 = vpack.c.b16 %v437, %v436
        %v446 = vunpack.c.l.b16 %v362
        %v447 = vunpack.c.l.b16 %v363
        %v448 = vunpack.c.l.b16 %v364
        %v449 = vunpack.c.l.b16 %v365
        %v450 = vpack.c.b16 %v447, %v446
        %v451 = vpack.c.b16 %v449, %v448
        %vm454 = vcmask 261120
        %v456 = vsel %vm454, %v438, 0
        %v459 = vsel %vm454, %v439, 0
        %v462 = vsel %vm454, %v440, 0
        %v465 = vsel %vm454, %v441, 0
        %467 = vmatprep.subr.bf16.mxu0 0
        %468 = vmatpush1.bf16.msra.mxu0 0
        %469 = vmatprep.subr.bf16.mxu0 0
        %470 = vmatpush1.bf16.msra.mxu0 0
        %471 = vmatprep.subr.bf16.mxu0 0
        %472 = vmatpush1.bf16.msra.mxu0 0
        %473 = vmatprep.subr.bf16.mxu0 0
        %474 = vmatpush1.bf16.msra.mxu0 0
        %475 = vmatprep.subr.bf16.mxu0 0
        %476 = vmatpush1.bf16.msra.mxu0 0
        %477 = vmatprep.subr.bf16.mxu0 0
        %478 = vmatpush1.bf16.msra.mxu0 0
        %479 = vmatprep.subr.bf16.mxu0 0
        %480 = vmatpush1.bf16.msra.mxu0 %v451
        %481 = vmatprep.subr.bf16.mxu0 0
        %482 = vmatpush1.bf16.msra.mxu0 %v450
        %483 = vmatprep.subr.bf16.mxu0 0
        %484 = vmatpush2.bf16.msra.mxu0 0
        %485 = vmatprep.subr.bf16.mxu0 0
        %486 = vmatpush2.bf16.msra.mxu0 0
        %487 = vmatprep.subr.bf16.mxu0 0
        %488 = vmatpush2.bf16.msra.mxu0 0
        %489 = vmatprep.subr.bf16.mxu0 0
        %490 = vmatpush2.bf16.msra.mxu0 0
        %491 = vmatprep.subr.bf16.mxu0 0
        %492 = vmatpush2.bf16.msra.mxu0 0
        %493 = vmatprep.subr.bf16.mxu0 0
        %494 = vmatpush2.bf16.msra.mxu0 0
        %495 = vmatprep.subr.bf16.mxu0 0
        %496 = vmatpush2.bf16.msra.mxu0 0
        %497 = vmatprep.subr.bf16.mxu0 0
        %498 = vmatpush2.bf16.msra.mxu0 0
        %499 = vmatprep.mubr.bf16.mxu0 0
        %500 = vmatmul.mubr.bf16.gmra.mxu0 %v456
        %v501 = vpop.f32.mrf.mxu0
        %v502 = vadd.f32 %v385, %v501
        %v503 = vpop.f32.mrf.mxu0
        %v504 = vpop.f32.mrf.mxu0
        %v505 = vadd.f32 %v390, %v504
        %v506 = vpop.f32.mrf.mxu0
        %507 = vmatprep.mubr.bf16.mxu0 0
        %508 = vmatmul.mubr.bf16.gmra.mxu0 %v459
        %v509 = vpop.f32.mrf.mxu0
        %v510 = vadd.f32 %v395, %v509
        %v511 = vpop.f32.mrf.mxu0
        %v512 = vpop.f32.mrf.mxu0
        %v513 = vadd.f32 %v400, %v512
        %v514 = vpop.f32.mrf.mxu0
        %515 = vmatprep.mubr.bf16.mxu0 0
        %516 = vmatmul.mubr.bf16.gmra.mxu0 %v462
        %v517 = vpop.f32.mrf.mxu0
        %v518 = vadd.f32 %v405, %v517
        %v519 = vpop.f32.mrf.mxu0
        %v520 = vpop.f32.mrf.mxu0
        %v521 = vadd.f32 %v410, %v520
        %v522 = vpop.f32.mrf.mxu0
        %523 = vmatprep.mubr.bf16.mxu0 0
        %524 = vmatmul.mubr.bf16.gmra.mxu0 %v465
        %v525 = vpop.f32.mrf.mxu0
        %v526 = vadd.f32 %v415, %v525
        %v527 = vpop.f32.mrf.mxu0
        %v528 = vpop.f32.mrf.mxu0
        %v529 = vadd.f32 %v420, %v528
        %v530 = vpop.f32.mrf.mxu0
        %531 = vdwg.mxu0
        %vm532 = vcmp.gt.f32.partialorder %v502, 0.0
        %vm533 = vcmp.gt.f32.partialorder %v505, 0.0
        %vm534 = vcmp.gt.f32.partialorder %v510, 0.0
        %vm535 = vcmp.gt.f32.partialorder %v513, 0.0
        %vm536 = vcmp.gt.f32.partialorder %v518, 0.0
        %vm537 = vcmp.gt.f32.partialorder %v521, 0.0
        %vm538 = vcmp.gt.f32.partialorder %v526, 0.0
        %vm539 = vcmp.gt.f32.partialorder %v529, 0.0
        %v540 = vstv %s361
        %v541 = vmul.f32 %v540, %v502
        %v542 = vmul.f32 %v540, %v505
        %v543 = vmul.f32 %v540, %v510
        %v544 = vmul.f32 %v540, %v513
        %v545 = vmul.f32 %v540, %v518
        %v546 = vmul.f32 %v540, %v521
        %v547 = vmul.f32 %v540, %v526
        %v548 = vmul.f32 %v540, %v529
        %v549 = vsel %vm532, %v502, %v541
        %v550 = vsel %vm533, %v505, %v542
        %v551 = vsel %vm534, %v510, %v543
        %v552 = vsel %vm535, %v513, %v544
        %v553 = vsel %vm536, %v518, %v545
        %v554 = vsel %vm537, %v521, %v546
        %v555 = vsel %vm538, %v526, %v547
        %v556 = vsel %vm539, %v529, %v548
        %v557 = vld [vmem:[%s4] sm:$0xf]
        %v558 = vld [vmem:[%s4 + $0x4] sm:$0xf]
        %v559 = vld [vmem:[%s4 + $0x8] sm:$0xf]
        %v560 = vld [vmem:[%s4 + $0xc] sm:$0xf]
        %v561 = vld [vmem:[%s4 + $0x10] sm:$0xf]
        %v562 = vld [vmem:[%s4 + $0x14] sm:$0xf]
        %v563 = vld [vmem:[%s5] sm:$0xff]
        %v564 = vld [vmem:[%s5 + $0x8] sm:$0xff]
        %v565 = vld [vmem:[%s5 + $0x10] sm:$0xff]
        %v566 = vld [vmem:[%s5 + $0x18] sm:$0xff]
        %v567 = vld [vmem:[%s5 + $0x20] sm:$0xff]
        %v568 = vld [vmem:[%s5 + $0x28] sm:$0xff]
        %v569 = vpack.c.bf16 %v550, %v549
        %v570 = vpack.c.bf16 %v552, %v551
        %v571 = vpack.c.bf16 %v554, %v553
        %v572 = vpack.c.bf16 %v556, %v555
        %574 = vset.pattern.permute.xlu0 0
        %575 = vperm.xlu0 %574, %v563
        %v576 = vpop.permute.xlu0 %575
        %579 = vset.pattern.permute.xlu0 0
        %580 = vperm.xlu0 %579, %v564
        %v581 = vpop.permute.xlu0 %580
        %584 = vset.pattern.permute.xlu0 0
        %585 = vperm.xlu0 %584, %v565
        %v586 = vpop.permute.xlu0 %585
        %589 = vset.pattern.permute.xlu0 0
        %590 = vperm.xlu0 %589, %v566
        %v591 = vpop.permute.xlu0 %590
        %594 = vset.pattern.permute.xlu0 0
        %595 = vperm.xlu0 %594, %v567
        %v596 = vpop.permute.xlu0 %595
        %599 = vset.pattern.permute.xlu0 0
        %600 = vperm.xlu0 %599, %v568
        %v601 = vpop.permute.xlu0 %600
        %v609 = vunpack.c.l.b16 %v557
        %v610 = vunpack.c.l.b16 %v558
        %v611 = vunpack.c.l.b16 %v559
        %v612 = vunpack.c.l.b16 %v560
        %v613 = vunpack.c.l.b16 %v561
        %v614 = vunpack.c.l.b16 %v562
        %v615 = vpack.c.b16 %v610, %v609
        %v616 = vpack.c.b16 %v612, %v611
        %v617 = vpack.c.b16 %v614, %v613
        %vm618 = vcmask 523264
        %v620 = vsel %vm618, %v615, 0
        %v623 = vsel %vm618, %v616, 0
        %v626 = vsel %vm618, %v617, 0
        %628 = vmatprep.subr.bf16.mxu0 0
        %629 = vmatpush1.bf16.msra.mxu0 0
        %630 = vmatprep.subr.bf16.mxu0 0
        %631 = vmatpush1.bf16.msra.mxu0 0
        %632 = vmatprep.subr.bf16.mxu0 0
        %633 = vmatpush1.bf16.msra.mxu0 0
        %634 = vmatprep.subr.bf16.mxu0 0
        %635 = vmatpush1.bf16.msra.mxu0 0
        %636 = vmatprep.subr.bf16.mxu0 0
        %637 = vmatpush1.bf16.msra.mxu0 %v572
        %638 = vmatprep.subr.bf16.mxu0 0
        %639 = vmatpush1.bf16.msra.mxu0 %v571
        %640 = vmatprep.subr.bf16.mxu0 0
        %641 = vmatpush1.bf16.msra.mxu0 %v570
        %642 = vmatprep.subr.bf16.mxu0 0
        %643 = vmatpush1.bf16.msra.mxu0 %v569
        %644 = vmatprep.subr.bf16.mxu0 0
        %645 = vmatpush2.bf16.msra.mxu0 0
        %646 = vmatprep.subr.bf16.mxu0 0
        %647 = vmatpush2.bf16.msra.mxu0 0
        %648 = vmatprep.subr.bf16.mxu0 0
        %649 = vmatpush2.bf16.msra.mxu0 0
        %650 = vmatprep.subr.bf16.mxu0 0
        %651 = vmatpush2.bf16.msra.mxu0 0
        %652 = vmatprep.subr.bf16.mxu0 0
        %653 = vmatpush2.bf16.msra.mxu0 0
        %654 = vmatprep.subr.bf16.mxu0 0
        %655 = vmatpush2.bf16.msra.mxu0 0
        %656 = vmatprep.subr.bf16.mxu0 0
        %657 = vmatpush2.bf16.msra.mxu0 0
        %658 = vmatprep.subr.bf16.mxu0 0
        %659 = vmatpush2.bf16.msra.mxu0 0
        %660 = vmatprep.mubr.bf16.mxu0 0
        %661 = vmatmul.mubr.bf16.gmra.mxu0 %v620
        %v662 = vpop.f32.mrf.mxu0
        %v663 = vadd.f32 %v576, %v662
        %v664 = vpop.f32.mrf.mxu0
        %v665 = vpop.f32.mrf.mxu0
        %v666 = vadd.f32 %v581, %v665
        %v667 = vpop.f32.mrf.mxu0
        %668 = vmatprep.mubr.bf16.mxu0 0
        %669 = vmatmul.mubr.bf16.gmra.mxu0 %v623
        %v670 = vpop.f32.mrf.mxu0
        %v671 = vadd.f32 %v586, %v670
        %v672 = vpop.f32.mrf.mxu0
        %v673 = vpop.f32.mrf.mxu0
        %v674 = vadd.f32 %v591, %v673
        %v675 = vpop.f32.mrf.mxu0
        %676 = vmatprep.mubr.bf16.mxu0 0
        %677 = vmatmul.mubr.bf16.gmra.mxu0 %v626
        %v678 = vpop.f32.mrf.mxu0
        %v679 = vadd.f32 %v596, %v678
        %v680 = vpop.f32.mrf.mxu0
        %v681 = vpop.f32.mrf.mxu0
        %v682 = vadd.f32 %v601, %v681
        %v683 = vpop.f32.mrf.mxu0
        %684 = vdwg.mxu0
        %vm685 = vcmp.gt.f32.partialorder %v663, 0.0
        %vm686 = vcmp.gt.f32.partialorder %v666, 0.0
        %vm687 = vcmp.gt.f32.partialorder %v671, 0.0
        %vm688 = vcmp.gt.f32.partialorder %v674, 0.0
        %vm689 = vcmp.gt.f32.partialorder %v679, 0.0
        %vm690 = vcmp.gt.f32.partialorder %v682, 0.0
        %v691 = vmul.f32 %v540, %v663
        %v692 = vmul.f32 %v540, %v666
        %v693 = vmul.f32 %v540, %v671
        %v694 = vmul.f32 %v540, %v674
        %v695 = vmul.f32 %v540, %v679
        %v696 = vmul.f32 %v540, %v682
        %v697 = vsel %vm685, %v663, %v691
        %v698 = vsel %vm686, %v666, %v692
        %v699 = vsel %vm687, %v671, %v693
        %v700 = vsel %vm688, %v674, %v694
        %v701 = vsel %vm689, %v679, %v695
        %v702 = vsel %vm690, %v682, %v696
        %v703 = vld [vmem:[%s6] sm:$0xf]
        %v704 = vld [vmem:[%s6 + $0x4] sm:$0xf]
        %v705 = vld [vmem:[%s7] sm:$0xff]
        %v706 = vld [vmem:[%s7 + $0x8] sm:$0xff]
        %v707 = vpack.c.bf16 %v698, %v697
        %v708 = vpack.c.bf16 %v700, %v699
        %v709 = vpack.c.bf16 %v702, %v701
        %711 = vset.pattern.permute.xlu0 0
        %712 = vperm.xlu0 %711, %v705
        %v713 = vpop.permute.xlu0 %712
        %716 = vset.pattern.permute.xlu0 0
        %717 = vperm.xlu0 %716, %v706
        %v718 = vpop.permute.xlu0 %717
        %v722 = vunpack.c.l.b16 %v703
        %v723 = vunpack.c.l.b16 %v704
        %v724 = vpack.c.b16 %v723, %v722
        %vm725 = vcmask 392192
        %v727 = vsel %vm725, %v724, 0
        %729 = vmatprep.subr.bf16.mxu0 0
        %730 = vmatpush1.bf16.msra.mxu0 0
        %731 = vmatprep.subr.bf16.mxu0 0
        %732 = vmatpush1.bf16.msra.mxu0 0
        %733 = vmatprep.subr.bf16.mxu0 0
        %734 = vmatpush1.bf16.msra.mxu0 0
        %735 = vmatprep.subr.bf16.mxu0 0
        %736 = vmatpush1.bf16.msra.mxu0 0
        %737 = vmatprep.subr.bf16.mxu0 0
        %738 = vmatpush1.bf16.msra.mxu0 0
        %739 = vmatprep.subr.bf16.mxu0 0
        %740 = vmatpush1.bf16.msra.mxu0 %v709
        %741 = vmatprep.subr.bf16.mxu0 0
        %742 = vmatpush1.bf16.msra.mxu0 %v708
        %743 = vmatprep.subr.bf16.mxu0 0
        %744 = vmatpush1.bf16.msra.mxu0 %v707
        %745 = vmatprep.subr.bf16.mxu0 0
        %746 = vmatpush2.bf16.msra.mxu0 0
        %747 = vmatprep.subr.bf16.mxu0 0
        %748 = vmatpush2.bf16.msra.mxu0 0
        %749 = vmatprep.subr.bf16.mxu0 0
        %750 = vmatpush2.bf16.msra.mxu0 0
        %751 = vmatprep.subr.bf16.mxu0 0
        %752 = vmatpush2.bf16.msra.mxu0 0
        %753 = vmatprep.subr.bf16.mxu0 0
        %754 = vmatpush2.bf16.msra.mxu0 0
        %755 = vmatprep.subr.bf16.mxu0 0
        %756 = vmatpush2.bf16.msra.mxu0 0
        %757 = vmatprep.subr.bf16.mxu0 0
        %758 = vmatpush2.bf16.msra.mxu0 0
        %759 = vmatprep.subr.bf16.mxu0 0
        %760 = vmatpush2.bf16.msra.mxu0 0
        %761 = vmatprep.mubr.bf16.mxu0 0
        %762 = vmatmul.mubr.bf16.gmra.mxu0 %v727
        %v763 = vpop.f32.mrf.mxu0
        %v764 = vadd.f32 %v713, %v763
        %v765 = vpop.f32.mrf.mxu0
        %v766 = vpop.f32.mrf.mxu0
        %v767 = vadd.f32 %v718, %v766
        %v768 = vpop.f32.mrf.mxu0
        %769 = vdwg.mxu0
        %770 = vst [vmem:[%s359] sm:$0xff] %v764
        %771 = vst [vmem:[%s359 + $0x8] sm:$0xff] %v767
        %s772 = sand.u32 %s204, 1
        %s773 = scalar_lea.sflag [#allocation5], %s772
        %s774 = sand.u32 %s204, 1
        %s775 = smul.addr %s774, 16
        %s776 = scalar_lea.vmem [#allocation4], %s775
        // Predicated region
        $region94: #{tpu_custom_call.1} parent=88 // pred_check
          %p777 = pneg %p214
        $region95: #{tpu_custom_call.1} parent=88 // pred_check_branch
          %779 = sbr.rel (%p777) target = $region97
        $region96: #{tpu_custom_call.1} parent=88 // pred_region
          %s781 = ssub.s32 256, 256
          %782 = vsyncadd %s773, %s781
          %s783 = smul.addr %s23, 128
          %s784 = scalar_lea.hbm %s8, %s783
          %s785 = sshll.u32 %s776, 4
          %s786 = int_to_ptr.vmem [resolvable:$true] %s785
          %791 = dma.vmem_to_hbm [thread:$0]  %s786, 256, %s784, %s773, 128, 256, 8
        $region97: #{tpu_custom_call.1} parent=88 // pred_fallthru
          _
      $region89: #{tpu_custom_call.1} parent=5 // pred_fallthru
        _
      %p792 = scmp.le.s32.totalorder 2, %s18
      // Predicated region
      $region98: #{tpu_custom_call.1} parent=5 // pred_check
        %p793 = pneg %p792
      $region99: #{tpu_custom_call.1} parent=5 // pred_check_branch
        %795 = sbr.rel (%p793) target = $region101
      $region100: #{tpu_custom_call.1} parent=5 // pred_region
        %s796 = ssub.s32 %s18, 2
        // Predicated region
        $region102: #{tpu_custom_call.1} parent=100 // pred_check
          %p797 = pneg %p220
        $region103: #{tpu_custom_call.1} parent=100 // pred_check_branch
          %799 = sbr.rel (%p797) target = $region105
        $region104: #{tpu_custom_call.1} parent=100 // pred_region
          %s800 = sand.u32 %s205, 1
          %s801 = scalar_lea.sflag [#allocation5], %s800
          %s802 = sand.u32 %s205, 1
          %s803 = smul.addr %s802, 16
          %s804 = scalar_lea.vmem [#allocation4], %s803
          %805 = dma.done %s801, 256
        $region105: #{tpu_custom_call.1} parent=100 // pred_fallthru
          _
      $region101: #{tpu_custom_call.1} parent=5 // pred_fallthru
        _
    $region6: #{tpu_custom_call.1} parent=1 // loop_footer
      %s22 = sadd.s32 1, %s18
    $region7: #{tpu_custom_call.1} parent=1 // loop_footer_branch
      %17 = sbr.rel target = $region3
    $region8: #{tpu_custom_call.1} parent=1 // loop_exit
      _
    %806 = vsyncpa [#allocation5], 1
    %s807 = scalar_lea.sflag [#allocation5], 1
    %808 = vsyncpa %s807, 1

</llo_original>
